<compile_context>
chip_gen: v7x
topology: tpu7x:2x2x1
jax: 0.10.0
libtpu: 0.0.40
codegen_flags: <defaults>
</compile_context>

<pallas_src>
import jax
import jax.numpy as jnp
from jax import lax
from jax.experimental import pallas as pl
from jax.experimental.pallas import tpu as pltpu

# ---- synthetic pyranet dimensions (small, consistent with the forward) ----
N = 2          # batch
C_IN = 4       # input channels
H = W = 16     # spatial
HIDDEN = 32    # conv3x3 output channels
C_OUT = 56     # pyranet raw output channels (> 50)
NARROW = 50    # out.narrow(1, 0, 50)
HW = H * W
K_IM2COL = 9 * C_IN  # 3x3 patch, (kh, kw, cin) flattening


def _pyranet_head_kernel(p_ref, w1_ref, b1_ref, w2_ref, b2_ref, o_ref):
    """Single invocation over the whole (tiny) problem.

    Transposed layout: HW (=256) on the lane axis, channels on sublanes.
      p_ref : (N, 9*C_IN, HW)   im2col patches
      w1_ref: (HIDDEN, 9*C_IN)  conv3x3 weights, (kh, kw, cin) flattened
      b1_ref: (HIDDEN, 1)
      w2_ref: (NARROW, HIDDEN)  conv1x1 weights, narrow(1,0,50) pre-folded
      b2_ref: (NARROW, 1)
      o_ref : (N, NARROW, HW)   channel-major == NCHW (reshape-only wrapper)
    """
    w1 = w1_ref[...]
    b1 = b1_ref[...]
    w2 = w2_ref[...]
    b2 = b2_ref[...]
    for n in range(p_ref.shape[0]):          # static Python loop, N == 2
        patches_t = p_ref[n]                 # (9*C_IN, HW)
        # conv3x3 as GEMM on the MXU: (HIDDEN, K) @ (K, HW) -> (HIDDEN, HW)
        h = jnp.dot(w1, patches_t, preferred_element_type=jnp.float32)
        h = jnp.maximum(h + b1, 0.0)         # bias + ReLU on full-lane vregs
        # conv1x1 (already narrowed): (NARROW, HIDDEN) @ (HIDDEN, HW)
        out = jnp.dot(w2, h, preferred_element_type=jnp.float32) + b2
        o_ref[n] = out                       # lane dim 256 -> unmasked stores


def _im2col_3x3_t(x_nchw):
    """3x3, stride 1, pad 1 patches in (kh, kw, cin)-flat order with HW on
    the last axis: (N, 9*C_IN, HW).  Pure pad/slice/stack glue in XLA."""
    n, c, h, w = x_nchw.shape
    xp = jnp.pad(x_nchw, ((0, 0), (0, 0), (1, 1), (1, 1)))
    cols = [xp[:, :, kh:kh + h, kw:kw + w] for kh in range(3) for kw in range(3)]
    patches = jnp.stack(cols, axis=1)        # (N, 9, C, H, W)
    return patches.reshape(n, 9 * c, h * w)  # (N, 9*C, HW)


def inferennet_fast_forward(x_nchw, w1, b1, w2, b2):
    """x_nchw: (N, C_IN, H, W) float32 -> (N, 50, H, W) float32."""
    n, c, h, w = x_nchw.shape
    hw = h * w
    patches_t = _im2col_3x3_t(x_nchw)                          # (N, 9*C, HW)

    # PyTorch conv weights (out, in, kh, kw) -> (out, kh, kw, in) -> (out, 9*in),
    # matching the im2col (kh, kw, cin) flattening above.
    w1_t = jnp.transpose(w1, (0, 2, 3, 1)).reshape(HIDDEN, 9 * c)
    b1_col = b1.reshape(HIDDEN, 1)
    # Fold out.narrow(1, 0, 50) into the second GEMM.
    w2_t = w2[:NARROW, :]                                      # (50, HIDDEN)
    b2_col = b2[:NARROW].reshape(NARROW, 1)

    flops = 2 * n * hw * (9 * c * HIDDEN + HIDDEN * NARROW)
    bytes_accessed = 4 * (patches_t.size + w1_t.size + b1_col.size
                          + w2_t.size + b2_col.size + n * NARROW * hw)

    out_flat = pl.pallas_call(
        _pyranet_head_kernel,
        out_shape=jax.ShapeDtypeStruct((n, NARROW, hw), jnp.float32),
        grid_spec=pltpu.PrefetchScalarGridSpec(
            num_scalar_prefetch=0,
            grid=(1,),  # single step: whole problem fits VMEM comfortably
            in_specs=[
                pl.BlockSpec((n, 9 * c, hw), lambda i: (0, 0, 0)),
                pl.BlockSpec((HIDDEN, 9 * c), lambda i: (0, 0)),
                pl.BlockSpec((HIDDEN, 1), lambda i: (0, 0)),
                pl.BlockSpec((NARROW, HIDDEN), lambda i: (0, 0)),
                pl.BlockSpec((NARROW, 1), lambda i: (0, 0)),
            ],
            out_specs=pl.BlockSpec((n, NARROW, hw), lambda i: (0, 0, 0)),
        ),
        compiler_params=pltpu.CompilerParams(
            dimension_semantics=("arbitrary",)),
        cost_estimate=pl.CostEstimate(
            flops=flops, transcendentals=0, bytes_accessed=bytes_accessed),
    )(patches_t, w1_t, b1_col, w2_t, b2_col)

    # Output is already channel-major (NCHW order) — reshape only, no transpose.
    return out_flat.reshape(n, NARROW, h, w)


def _reference_forward(x_nchw, w1, b1, w2, b2):
    """Pure-JAX reference (XLA convs) for correctness checking."""
    y = lax.conv_general_dilated(
        x_nchw, w1, window_strides=(1, 1), padding="SAME",
        dimension_numbers=("NCHW", "OIHW", "NCHW"))
    y = jnp.maximum(y + b1[None, :, None, None], 0.0)
    y = lax.conv_general_dilated(
        y, w2[:, :, None, None], window_strides=(1, 1), padding="VALID",
        dimension_numbers=("NCHW", "OIHW", "NCHW"))
    y = y + b2[None, :, None, None]
    return y[:, :NARROW, :, :]                                 # narrow(1, 0, 50)


if __name__ == "__main__":
    key = jax.random.PRNGKey(0)
    k_x, k_w1, k_b1, k_w2, k_b2 = jax.random.split(key, 5)

    # deterministic synthetic input + weights (PyTorch conv weight shapes)
    x = jax.random.normal(k_x, (N, C_IN, H, W), dtype=jnp.float32)
    w1 = 0.1 * jax.random.normal(k_w1, (HIDDEN, C_IN, 3, 3), dtype=jnp.float32)
    b1 = 0.1 * jax.random.normal(k_b1, (HIDDEN,), dtype=jnp.float32)
    w2 = 0.1 * jax.random.normal(k_w2, (C_OUT, HIDDEN), dtype=jnp.float32)
    b2 = 0.1 * jax.random.normal(k_b2, (C_OUT,), dtype=jnp.float32)

    out = jax.block_until_ready(inferennet_fast_forward(x, w1, b1, w2, b2))
    assert out.shape == (N, NARROW, H, W), out.shape

    ref = jax.block_until_ready(_reference_forward(x, w1, b1, w2, b2))
    assert jnp.allclose(out, ref, rtol=1e-2, atol=1e-2), "mismatch vs reference"

    print("KERNEL_OK")
</pallas_src>

<mosaic_0001>
module attributes {stable_mosaic.version = 11 : i64} {
  func.func @_pyranet_head_kernel(%arg0: i32, %arg1: memref<2x36x256xf32, #tpu.memory_space<vmem>>, %arg2: memref<32x36xf32, #tpu.memory_space<vmem>>, %arg3: memref<32x1xf32, #tpu.memory_space<vmem>>, %arg4: memref<50x32xf32, #tpu.memory_space<vmem>>, %arg5: memref<50x1xf32, #tpu.memory_space<vmem>>, %arg6: memref<2x50x256xf32, #tpu.memory_space<vmem>>) attributes {dimension_semantics = [#tpu.dimension_semantics<arbitrary>], iteration_bounds = array<i64: 1>, scalar_prefetch = 0 : i64, scratch_operands = 0 : i64, tpu.core_type = #tpu.core_type<tc>, window_params = [{pipeline_mode = #tpu.pipeline_mode<synchronous>, transform_indices = @transform_0, window_bounds = array<i64: 2, 36, 256>}, {pipeline_mode = #tpu.pipeline_mode<synchronous>, transform_indices = @transform_1, window_bounds = array<i64: 32, 36>}, {pipeline_mode = #tpu.pipeline_mode<synchronous>, transform_indices = @transform_2, window_bounds = array<i64: 32, 1>}, {pipeline_mode = #tpu.pipeline_mode<synchronous>, transform_indices = @transform_3, window_bounds = array<i64: 50, 32>}, {pipeline_mode = #tpu.pipeline_mode<synchronous>, transform_indices = @transform_4, window_bounds = array<i64: 50, 1>}, {pipeline_mode = #tpu.pipeline_mode<synchronous>, transform_indices = @transform_5, window_bounds = array<i64: 2, 50, 256>}]} {
    %c0 = arith.constant 0 : index
    %c0_0 = arith.constant 0 : index
    %0 = vector.load %arg2[%c0, %c0_0] : memref<32x36xf32, #tpu.memory_space<vmem>>, vector<32x36xf32>
    %c0_1 = arith.constant 0 : index
    %c0_2 = arith.constant 0 : index
    %1 = vector.load %arg3[%c0_1, %c0_2] : memref<32x1xf32, #tpu.memory_space<vmem>>, vector<32x1xf32>
    %c0_3 = arith.constant 0 : index
    %c0_4 = arith.constant 0 : index
    %2 = vector.load %arg4[%c0_3, %c0_4] : memref<50x32xf32, #tpu.memory_space<vmem>>, vector<50x32xf32>
    %c0_5 = arith.constant 0 : index
    %c0_6 = arith.constant 0 : index
    %3 = vector.load %arg5[%c0_5, %c0_6] : memref<50x1xf32, #tpu.memory_space<vmem>>, vector<50x1xf32>
    %c0_7 = arith.constant 0 : index
    %c0_8 = arith.constant 0 : index
    %c0_9 = arith.constant 0 : index
    %4 = vector.load %arg1[%c0_7, %c0_8, %c0_9] : memref<2x36x256xf32, #tpu.memory_space<vmem>>, vector<1x36x256xf32>
    %5 = vector.shape_cast %4 : vector<1x36x256xf32> to vector<36x256xf32>
    %cst = arith.constant dense<0.000000e+00> : vector<32x256xf32>
    %6 = tpu.matmul %0, %5, %cst {dimension_numbers = #tpu.dot_dimension_numbers<[1], [0], [0], [1], [0, 0, 1, 1], [], []>} : vector<32x36xf32>, vector<36x256xf32>, vector<32x256xf32> -> vector<32x256xf32>
    %7 = vector.broadcast %1 : vector<32x1xf32> to vector<32x256xf32>
    %8 = arith.addf %6, %7 : vector<32x256xf32>
    %cst_10 = arith.constant 0.000000e+00 : f32
    %9 = vector.broadcast %cst_10 : f32 to vector<32x256xf32>
    %10 = arith.maximumf %8, %9 : vector<32x256xf32>
    %cst_11 = arith.constant dense<0.000000e+00> : vector<50x256xf32>
    %11 = tpu.matmul %2, %10, %cst_11 {dimension_numbers = #tpu.dot_dimension_numbers<[1], [0], [0], [1], [0, 0, 1, 1], [], []>} : vector<50x32xf32>, vector<32x256xf32>, vector<50x256xf32> -> vector<50x256xf32>
    %12 = vector.broadcast %3 : vector<50x1xf32> to vector<50x256xf32>
    %13 = arith.addf %11, %12 : vector<50x256xf32>
    %c0_12 = arith.constant 0 : index
    %c0_13 = arith.constant 0 : index
    %c0_14 = arith.constant 0 : index
    %14 = vector.load %arg6[%c0_12, %c0_13, %c0_14] : memref<2x50x256xf32, #tpu.memory_space<vmem>>, vector<1x50x256xf32>
    %15 = vector.shape_cast %14 : vector<1x50x256xf32> to vector<50x256xf32>
    %16 = vector.shape_cast %13 : vector<50x256xf32> to vector<1x50x256xf32>
    tpu.vector_store %arg6[%c0_12, %c0_13, %c0_14], %16 {strides = array<i32>} : memref<2x50x256xf32, #tpu.memory_space<vmem>>, vector<1x50x256xf32>,
    %c1 = arith.constant 1 : index
    %c0_15 = arith.constant 0 : index
    %c0_16 = arith.constant 0 : index
    %17 = vector.load %arg1[%c1, %c0_15, %c0_16] : memref<2x36x256xf32, #tpu.memory_space<vmem>>, vector<1x36x256xf32>
    %18 = vector.shape_cast %17 : vector<1x36x256xf32> to vector<36x256xf32>
    %cst_17 = arith.constant dense<0.000000e+00> : vector<32x256xf32>
    %19 = tpu.matmul %0, %18, %cst_17 {dimension_numbers = #tpu.dot_dimension_numbers<[1], [0], [0], [1], [0, 0, 1, 1], [], []>} : vector<32x36xf32>, vector<36x256xf32>, vector<32x256xf32> -> vector<32x256xf32>
    %20 = vector.broadcast %1 : vector<32x1xf32> to vector<32x256xf32>
    %21 = arith.addf %19, %20 : vector<32x256xf32>
    %cst_18 = arith.constant 0.000000e+00 : f32
    %22 = vector.broadcast %cst_18 : f32 to vector<32x256xf32>
    %23 = arith.maximumf %21, %22 : vector<32x256xf32>
    %cst_19 = arith.constant dense<0.000000e+00> : vector<50x256xf32>
    %24 = tpu.matmul %2, %23, %cst_19 {dimension_numbers = #tpu.dot_dimension_numbers<[1], [0], [0], [1], [0, 0, 1, 1], [], []>} : vector<50x32xf32>, vector<32x256xf32>, vector<50x256xf32> -> vector<50x256xf32>
    %25 = vector.broadcast %3 : vector<50x1xf32> to vector<50x256xf32>
    %26 = arith.addf %24, %25 : vector<50x256xf32>
    %c1_20 = arith.constant 1 : index
    %c0_21 = arith.constant 0 : index
    %c0_22 = arith.constant 0 : index
    %27 = vector.load %arg6[%c1_20, %c0_21, %c0_22] : memref<2x50x256xf32, #tpu.memory_space<vmem>>, vector<1x50x256xf32>
    %28 = vector.shape_cast %27 : vector<1x50x256xf32> to vector<50x256xf32>
    %29 = vector.shape_cast %26 : vector<50x256xf32> to vector<1x50x256xf32>
    tpu.vector_store %arg6[%c1_20, %c0_21, %c0_22], %29 {strides = array<i32>} : memref<2x50x256xf32, #tpu.memory_space<vmem>>, vector<1x50x256xf32>,
    return
  }
  func.func @transform_0(%arg0: i32) -> (i32, i32, i32) {
    %c0_i32 = arith.constant 0 : i32
    %c0_i32_0 = arith.constant 0 : i32
    %c0_i32_1 = arith.constant 0 : i32
    %c0_i32_2 = arith.constant 0 : i32
    return %c0_i32, %c0_i32_0, %c0_i32_1 : i32, i32, i32
  }
  func.func @transform_1(%arg0: i32) -> (i32, i32) {
    %c0_i32 = arith.constant 0 : i32
    %c0_i32_0 = arith.constant 0 : i32
    %c0_i32_1 = arith.constant 0 : i32
    return %c0_i32, %c0_i32_0 : i32, i32
  }
  func.func @transform_2(%arg0: i32) -> (i32, i32) {
    %c0_i32 = arith.constant 0 : i32
    %c0_i32_0 = arith.constant 0 : i32
    %c0_i32_1 = arith.constant 0 : i32
    return %c0_i32, %c0_i32_0 : i32, i32
  }
  func.func @transform_3(%arg0: i32) -> (i32, i32) {
    %c0_i32 = arith.constant 0 : i32
    %c0_i32_0 = arith.constant 0 : i32
    %c0_i32_1 = arith.constant 0 : i32
    return %c0_i32, %c0_i32_0 : i32, i32
  }
  func.func @transform_4(%arg0: i32) -> (i32, i32) {
    %c0_i32 = arith.constant 0 : i32
    %c0_i32_0 = arith.constant 0 : i32
    %c0_i32_1 = arith.constant 0 : i32
    return %c0_i32, %c0_i32_0 : i32, i32
  }
  func.func @transform_5(%arg0: i32) -> (i32, i32, i32) {
    %c0_i32 = arith.constant 0 : i32
    %c0_i32_0 = arith.constant 0 : i32
    %c0_i32_1 = arith.constant 0 : i32
    %c0_i32_2 = arith.constant 0 : i32
    return %c0_i32, %c0_i32_0, %c0_i32_1 : i32, i32, i32
  }
}

</mosaic_0001>

<llo_original>
// kernel: tpu_custom_call.1
$region0: #{tpu_custom_call.1}
  #allocation0 [shape = 'u32[]', space=smem, size = 0x4, offset = 0x4, fixed_abs, tag = 'smem constant byte address 0x4 - core index']
  #allocation1 [shape = 'u32[144,128]{1,0:T(1,128)}', space=vmem, size = 0x12000, scoped, tag = 'internal scratch']
  %s0 = inlined_call_operand.vmem [shape: f32[2,36,256], index: 0, kind: input, shape index: {}]
  %s1 = inlined_call_operand.vmem [shape: f32[32,36], index: 1, kind: input, shape index: {}]
  %s2 = inlined_call_operand.vmem [shape: f32[32,1], index: 2, kind: input, shape index: {}]
  %s3 = inlined_call_operand.vmem [shape: f32[50,32], index: 3, kind: input, shape index: {}]
  %s4 = inlined_call_operand.vmem [shape: f32[50,1], index: 4, kind: input, shape index: {}]
  %s5 = inlined_call_operand.vmem [shape: f32[2,50,256], index: 5, kind: output, shape index: {}]
  %s6 = sld [smem:[#allocation0]]
  $region30: #{tpu_custom_call.1} parent=0
    _
  %s8 = ssub.s32 1, %s6
  %s9 = scalar_select 0, %s8, %s6
  // Predicated region
  $region2: #{tpu_custom_call.1} parent=0 // pred_check
    _
  $region3: #{tpu_custom_call.1} parent=0 // pred_check_branch
    %11 = sbr.rel (0) target = $region5
  $region4: #{tpu_custom_call.1} parent=0 // pred_region
    _
  $region5: #{tpu_custom_call.1} parent=0 // pred_fallthru
    _
  // Predicated region
  $region6: #{tpu_custom_call.1} parent=0 // pred_check
    _
  $region7: #{tpu_custom_call.1} parent=0 // pred_check_branch
    %13 = sbr.rel (0) target = $region9
  $region8: #{tpu_custom_call.1} parent=0 // pred_region
    _
  $region9: #{tpu_custom_call.1} parent=0 // pred_fallthru
    _
  // Predicated region
  $region10: #{tpu_custom_call.1} parent=0 // pred_check
    _
  $region11: #{tpu_custom_call.1} parent=0 // pred_check_branch
    %15 = sbr.rel (0) target = $region13
  $region12: #{tpu_custom_call.1} parent=0 // pred_region
    _
  $region13: #{tpu_custom_call.1} parent=0 // pred_fallthru
    _
  // Predicated region
  $region14: #{tpu_custom_call.1} parent=0 // pred_check
    _
  $region15: #{tpu_custom_call.1} parent=0 // pred_check_branch
    %17 = sbr.rel (0) target = $region17
  $region16: #{tpu_custom_call.1} parent=0 // pred_region
    _
  $region17: #{tpu_custom_call.1} parent=0 // pred_fallthru
    _
  // Predicated region
  $region18: #{tpu_custom_call.1} parent=0 // pred_check
    _
  $region19: #{tpu_custom_call.1} parent=0 // pred_check_branch
    %19 = sbr.rel (0) target = $region21
  $region20: #{tpu_custom_call.1} parent=0 // pred_region
    _
  $region21: #{tpu_custom_call.1} parent=0 // pred_fallthru
    _
  %v20 = vld [vmem:[%s1] sm:$0xff]
  %v21 = vld [vmem:[%s1 + $0x8] sm:$0xff]
  %v22 = vld [vmem:[%s1 + $0x10] sm:$0xff]
  %v23 = vld [vmem:[%s1 + $0x18] sm:$0xff]
  %v24 = vld [vmem:[%s2] sm:$0xff]
  %v25 = vld [vmem:[%s2 + $0x8] sm:$0xff]
  %v26 = vld [vmem:[%s2 + $0x10] sm:$0xff]
  %v27 = vld [vmem:[%s2 + $0x18] sm:$0xff]
  %v28 = vld [vmem:[%s3] sm:$0xff]
  %v29 = vld [vmem:[%s3 + $0x8] sm:$0xff]
  %v30 = vld [vmem:[%s3 + $0x10] sm:$0xff]
  %v31 = vld [vmem:[%s3 + $0x18] sm:$0xff]
  %v32 = vld [vmem:[%s3 + $0x20] sm:$0xff]
  %v33 = vld [vmem:[%s3 + $0x28] sm:$0xff]
  %v34 = vld [vmem:[%s3 + $0x30] sm:$0x3]
  %v35 = vld [vmem:[%s4] sm:$0xff]
  %v36 = vld [vmem:[%s4 + $0x8] sm:$0xff]
  %v37 = vld [vmem:[%s4 + $0x10] sm:$0xff]
  %v38 = vld [vmem:[%s4 + $0x18] sm:$0xff]
  %v39 = vld [vmem:[%s4 + $0x20] sm:$0xff]
  %v40 = vld [vmem:[%s4 + $0x28] sm:$0xff]
  %v41 = vld [vmem:[%s4 + $0x30] sm:$0x3]
  %v42 = vld [vmem:[%s0] sm:$0xff]
  %v43 = vld [vmem:[%s0 + $0x8] sm:$0xff]
  %v44 = vld [vmem:[%s0 + $0x10] sm:$0xff]
  %v45 = vld [vmem:[%s0 + $0x18] sm:$0xff]
  %v46 = vld [vmem:[%s0 + $0x20] sm:$0xff]
  %v47 = vld [vmem:[%s0 + $0x28] sm:$0xff]
  %v48 = vld [vmem:[%s0 + $0x30] sm:$0xff]
  %v49 = vld [vmem:[%s0 + $0x38] sm:$0xff]
  %v50 = vld [vmem:[%s0 + $0x40] sm:$0xf]
  %v51 = vld [vmem:[%s0 + $0x48] sm:$0xf]
  %53 = vset.pattern.permute.xlu0 0
  %54 = vperm.xlu0 %53, %v24
  %v55 = vpop.permute.xlu0 %54
  %58 = vset.pattern.permute.xlu0 0
  %59 = vperm.xlu0 %58, %v25
  %v60 = vpop.permute.xlu0 %59
  %63 = vset.pattern.permute.xlu0 0
  %64 = vperm.xlu0 %63, %v26
  %v65 = vpop.permute.xlu0 %64
  %68 = vset.pattern.permute.xlu0 0
  %69 = vperm.xlu0 %68, %v27
  %v70 = vpop.permute.xlu0 %69
  %vm72 = vcmask 293888
  %v74 = vsel %vm72, %v20, 0
  %v77 = vsel %vm72, %v21, 0
  %v80 = vsel %vm72, %v22, 0
  %v83 = vsel %vm72, %v23, 0
  %vm85 = vcmask 1043456
  %v87 = vsel %vm85, %v50, 0
  %v90 = vsel %vm85, %v51, 0
  %92 = vmatprep.subr.mxu0 %v43
  %93 = vmatpush1.msra.mxu0 %v42
  %94 = vmatprep.subr.mxu0 %v45
  %95 = vmatpush1.msra.mxu0 %v44
  %96 = vmatprep.subr.mxu0 %v47
  %97 = vmatpush1.msra.mxu0 %v46
  %98 = vmatprep.subr.mxu0 %v49
  %99 = vmatpush1.msra.mxu0 %v48
  %100 = vmatprep.subr.mxu0 %v90
  %101 = vmatpush1.msra.mxu0 %v87
  %102 = vmatprep.subr.mxu0 0.0
  %103 = vmatpush1.msra.mxu0 0.0
  %104 = vmatprep.subr.mxu0 0.0
  %105 = vmatpush1.msra.mxu0 0.0
  %106 = vmatprep.subr.mxu0 0.0
  %107 = vmatpush1.msra.mxu0 0.0
  %108 = vmatprep.subr.mxu0 0.0
  %109 = vmatpush1.msra.mxu0 0.0
  %110 = vmatprep.subr.mxu0 0.0
  %111 = vmatpush1.msra.mxu0 0.0
  %112 = vmatprep.subr.mxu0 0.0
  %113 = vmatpush1.msra.mxu0 0.0
  %114 = vmatprep.subr.mxu0 0.0
  %115 = vmatpush1.msra.mxu0 0.0
  %116 = vmatprep.subr.mxu0 0.0
  %117 = vmatpush1.msra.mxu0 0.0
  %118 = vmatprep.subr.mxu0 0.0
  %119 = vmatpush1.msra.mxu0 0.0
  %120 = vmatprep.subr.mxu0 0.0
  %121 = vmatpush1.msra.mxu0 0.0
  %122 = vmatprep.subr.mxu0 0.0
  %123 = vmatpush1.msra.mxu0 0.0
  %124 = vmatprep.subr.mxu0 0.0
  %125 = vmatpush1.msra.mxu0 0.0
  %126 = vmatprep.subr.mxu0 0.0
  %127 = vmatpush1.msra.mxu0 0.0
  %128 = vmatprep.subr.mxu0 0.0
  %129 = vmatpush1.msra.mxu0 0.0
  %130 = vmatprep.subr.mxu0 0.0
  %131 = vmatpush1.msra.mxu0 0.0
  %132 = vmatprep.subr.mxu0 0.0
  %133 = vmatpush1.msra.mxu0 0.0
  %134 = vmatprep.subr.mxu0 0.0
  %135 = vmatpush1.msra.mxu0 0.0
  %136 = vmatprep.subr.mxu0 0.0
  %137 = vmatpush1.msra.mxu0 0.0
  %138 = vmatprep.subr.mxu0 0.0
  %139 = vmatpush1.msra.mxu0 0.0
  %140 = vmatprep.subr.mxu0 0.0
  %141 = vmatpush1.msra.mxu0 0.0
  %142 = vmatprep.subr.mxu0 0.0
  %143 = vmatpush1.msra.mxu0 0.0
  %144 = vmatprep.subr.mxu0 0.0
  %145 = vmatpush1.msra.mxu0 0.0
  %146 = vmatprep.subr.mxu0 0.0
  %147 = vmatpush1.msra.mxu0 0.0
  %148 = vmatprep.subr.mxu0 0.0
  %149 = vmatpush1.msra.mxu0 0.0
  %150 = vmatprep.subr.mxu0 0.0
  %151 = vmatpush1.msra.mxu0 0.0
  %152 = vmatprep.subr.mxu0 0.0
  %153 = vmatpush1.msra.mxu0 0.0
  %154 = vmatprep.subr.mxu0 0.0
  %155 = vmatpush1.msra.mxu0 0.0
  %156 = vmatprep.mubr.f32.mxu0 0.0
  %157 = vmatmul.mubr.f32.gmra.mrb[0].mxu0 %v74
  %v158 = vpop.f32.mrb[0].mxu0
  %v159 = vadd.f32 %v55, %v158
  %v160 = vpop.f32.mrb[0].mxu0
  %v161 = vadd.f32 %v55, %v160
  %162 = vmatprep.mubr.f32.mxu0 0.0
  %163 = vmatmul.mubr.f32.gmra.mrb[0].mxu0 %v77
  %v164 = vpop.f32.mrb[0].mxu0
  %v165 = vadd.f32 %v60, %v164
  %v166 = vpop.f32.mrb[0].mxu0
  %v167 = vadd.f32 %v60, %v166
  %168 = vmatprep.mubr.f32.mxu0 0.0
  %169 = vmatmul.mubr.f32.gmra.mrb[0].mxu0 %v80
  %v170 = vpop.f32.mrb[0].mxu0
  %v171 = vadd.f32 %v65, %v170
  %v172 = vpop.f32.mrb[0].mxu0
  %v173 = vadd.f32 %v65, %v172
  %174 = vmatprep.mubr.f32.mxu0 0.0
  %175 = vmatmul.mubr.f32.gmra.mrb[0].mxu0 %v83
  %v176 = vpop.f32.mrb[0].mxu0
  %v177 = vadd.f32 %v70, %v176
  %v178 = vpop.f32.mrb[0].mxu0
  %v179 = vadd.f32 %v70, %v178
  %180 = vdwg.mxu0
  %v181 = vmax.f32 %v159, 0.0
  %v182 = vmax.f32 %v161, 0.0
  %v183 = vmax.f32 %v165, 0.0
  %v184 = vmax.f32 %v167, 0.0
  %v185 = vmax.f32 %v171, 0.0
  %v186 = vmax.f32 %v173, 0.0
  %v187 = vmax.f32 %v177, 0.0
  %v188 = vmax.f32 %v179, 0.0
  %190 = vset.pattern.permute.xlu0 0
  %191 = vperm.xlu0 %190, %v35
  %v192 = vpop.permute.xlu0 %191
  %195 = vset.pattern.permute.xlu0 0
  %196 = vperm.xlu0 %195, %v36
  %v197 = vpop.permute.xlu0 %196
  %200 = vset.pattern.permute.xlu0 0
  %201 = vperm.xlu0 %200, %v37
  %v202 = vpop.permute.xlu0 %201
  %205 = vset.pattern.permute.xlu0 0
  %206 = vperm.xlu0 %205, %v38
  %v207 = vpop.permute.xlu0 %206
  %210 = vset.pattern.permute.xlu0 0
  %211 = vperm.xlu0 %210, %v39
  %v212 = vpop.permute.xlu0 %211
  %215 = vset.pattern.permute.xlu0 0
  %216 = vperm.xlu0 %215, %v40
  %v217 = vpop.permute.xlu0 %216
  %220 = vset.pattern.permute.xlu0 0
  %221 = vperm.xlu0 %220, %v41
  %v222 = vpop.permute.xlu0 %221
  %vm224 = vcmask 261120
  %v226 = vsel %vm224, %v28, 0
  %v229 = vsel %vm224, %v29, 0
  %v232 = vsel %vm224, %v30, 0
  %v235 = vsel %vm224, %v31, 0
  %v238 = vsel %vm224, %v32, 0
  %v241 = vsel %vm224, %v33, 0
  %v244 = vsel %vm224, %v34, 0
  %246 = vmatprep.subr.mxu0 %v182
  %247 = vmatpush1.msra.mxu0 %v181
  %248 = vmatprep.subr.mxu0 %v184
  %249 = vmatpush1.msra.mxu0 %v183
  %250 = vmatprep.subr.mxu0 %v186
  %251 = vmatpush1.msra.mxu0 %v185
  %252 = vmatprep.subr.mxu0 %v188
  %253 = vmatpush1.msra.mxu0 %v187
  %254 = vmatprep.subr.mxu0 0.0
  %255 = vmatpush1.msra.mxu0 0.0
  %256 = vmatprep.subr.mxu0 0.0
  %257 = vmatpush1.msra.mxu0 0.0
  %258 = vmatprep.subr.mxu0 0.0
  %259 = vmatpush1.msra.mxu0 0.0
  %260 = vmatprep.subr.mxu0 0.0
  %261 = vmatpush1.msra.mxu0 0.0
  %262 = vmatprep.subr.mxu0 0.0
  %263 = vmatpush1.msra.mxu0 0.0
  %264 = vmatprep.subr.mxu0 0.0
  %265 = vmatpush1.msra.mxu0 0.0
  %266 = vmatprep.subr.mxu0 0.0
  %267 = vmatpush1.msra.mxu0 0.0
  %268 = vmatprep.subr.mxu0 0.0
  %269 = vmatpush1.msra.mxu0 0.0
  %270 = vmatprep.subr.mxu0 0.0
  %271 = vmatpush1.msra.mxu0 0.0
  %272 = vmatprep.subr.mxu0 0.0
  %273 = vmatpush1.msra.mxu0 0.0
  %274 = vmatprep.subr.mxu0 0.0
  %275 = vmatpush1.msra.mxu0 0.0
  %276 = vmatprep.subr.mxu0 0.0
  %277 = vmatpush1.msra.mxu0 0.0
  %278 = vmatprep.subr.mxu0 0.0
  %279 = vmatpush1.msra.mxu0 0.0
  %280 = vmatprep.subr.mxu0 0.0
  %281 = vmatpush1.msra.mxu0 0.0
  %282 = vmatprep.subr.mxu0 0.0
  %283 = vmatpush1.msra.mxu0 0.0
  %284 = vmatprep.subr.mxu0 0.0
  %285 = vmatpush1.msra.mxu0 0.0
  %286 = vmatprep.subr.mxu0 0.0
  %287 = vmatpush1.msra.mxu0 0.0
  %288 = vmatprep.subr.mxu0 0.0
  %289 = vmatpush1.msra.mxu0 0.0
  %290 = vmatprep.subr.mxu0 0.0
  %291 = vmatpush1.msra.mxu0 0.0
  %292 = vmatprep.subr.mxu0 0.0
  %293 = vmatpush1.msra.mxu0 0.0
  %294 = vmatprep.subr.mxu0 0.0
  %295 = vmatpush1.msra.mxu0 0.0
  %296 = vmatprep.subr.mxu0 0.0
  %297 = vmatpush1.msra.mxu0 0.0
  %298 = vmatprep.subr.mxu0 0.0
  %299 = vmatpush1.msra.mxu0 0.0
  %300 = vmatprep.subr.mxu0 0.0
  %301 = vmatpush1.msra.mxu0 0.0
  %302 = vmatprep.subr.mxu0 0.0
  %303 = vmatpush1.msra.mxu0 0.0
  %304 = vmatprep.subr.mxu0 0.0
  %305 = vmatpush1.msra.mxu0 0.0
  %306 = vmatprep.subr.mxu0 0.0
  %307 = vmatpush1.msra.mxu0 0.0
  %308 = vmatprep.subr.mxu0 0.0
  %309 = vmatpush1.msra.mxu0 0.0
  %310 = vmatprep.mubr.f32.mxu0 0.0
  %311 = vmatmul.mubr.f32.gmra.mrb[0].mxu0 %v226
  %v312 = vpop.f32.mrb[0].mxu0
  %v313 = vadd.f32 %v192, %v312
  %v314 = vpop.f32.mrb[0].mxu0
  %v315 = vadd.f32 %v192, %v314
  %316 = vmatprep.mubr.f32.mxu0 0.0
  %317 = vmatmul.mubr.f32.gmra.mrb[0].mxu0 %v229
  %v318 = vpop.f32.mrb[0].mxu0
  %v319 = vadd.f32 %v197, %v318
  %v320 = vpop.f32.mrb[0].mxu0
  %v321 = vadd.f32 %v197, %v320
  %322 = vmatprep.mubr.f32.mxu0 0.0
  %323 = vmatmul.mubr.f32.gmra.mrb[0].mxu0 %v232
  %v324 = vpop.f32.mrb[0].mxu0
  %v325 = vadd.f32 %v202, %v324
  %v326 = vpop.f32.mrb[0].mxu0
  %v327 = vadd.f32 %v202, %v326
  %328 = vmatprep.mubr.f32.mxu0 0.0
  %329 = vmatmul.mubr.f32.gmra.mrb[0].mxu0 %v235
  %v330 = vpop.f32.mrb[0].mxu0
  %v331 = vadd.f32 %v207, %v330
  %v332 = vpop.f32.mrb[0].mxu0
  %v333 = vadd.f32 %v207, %v332
  %334 = vmatprep.mubr.f32.mxu0 0.0
  %335 = vmatmul.mubr.f32.gmra.mrb[0].mxu0 %v238
  %v336 = vpop.f32.mrb[0].mxu0
  %v337 = vadd.f32 %v212, %v336
  %v338 = vpop.f32.mrb[0].mxu0
  %v339 = vadd.f32 %v212, %v338
  %340 = vmatprep.mubr.f32.mxu0 0.0
  %341 = vmatmul.mubr.f32.gmra.mrb[0].mxu0 %v241
  %v342 = vpop.f32.mrb[0].mxu0
  %v343 = vadd.f32 %v217, %v342
  %v344 = vpop.f32.mrb[0].mxu0
  %v345 = vadd.f32 %v217, %v344
  %346 = vmatprep.mubr.f32.mxu0 0.0
  %347 = vmatmul.mubr.f32.gmra.mrb[0].mxu0 %v244
  %v348 = vpop.f32.mrb[0].mxu0
  %v349 = vadd.f32 %v222, %v348
  %v350 = vpop.f32.mrb[0].mxu0
  %v351 = vadd.f32 %v222, %v350
  %352 = vdwg.mxu0
  %353 = vst [vmem:[%s5] sm:$0xff] %v313
  %354 = vst [vmem:[%s5 + $0x8] sm:$0xff] %v315
  %355 = vst [vmem:[%s5 + $0x10] sm:$0xff] %v319
  %356 = vst [vmem:[%s5 + $0x18] sm:$0xff] %v321
  %357 = vst [vmem:[%s5 + $0x20] sm:$0xff] %v325
  %358 = vst [vmem:[%s5 + $0x28] sm:$0xff] %v327
  %359 = vst [vmem:[%s5 + $0x30] sm:$0xff] %v331
  %360 = vst [vmem:[%s5 + $0x38] sm:$0xff] %v333
  %361 = vst [vmem:[%s5 + $0x40] sm:$0xff] %v337
  %362 = vst [vmem:[%s5 + $0x48] sm:$0xff] %v339
  %363 = vst [vmem:[%s5 + $0x50] sm:$0xff] %v343
  %364 = vst [vmem:[%s5 + $0x58] sm:$0xff] %v345
  %365 = vst [vmem:[%s5 + $0x60] sm:$0x3] %v349
  %366 = vst [vmem:[%s5 + $0x68] sm:$0x3] %v351
  %s367 = scalar_lea.vmem %s0, 80
  %v368 = vld [vmem:[%s367] sm:$0xff]
  %v369 = vld [vmem:[%s367 + $0x8] sm:$0xff]
  %v370 = vld [vmem:[%s367 + $0x10] sm:$0xff]
  %v371 = vld [vmem:[%s367 + $0x18] sm:$0xff]
  %v372 = vld [vmem:[%s367 + $0x20] sm:$0xff]
  %v373 = vld [vmem:[%s367 + $0x28] sm:$0xff]
  %v374 = vld [vmem:[%s367 + $0x30] sm:$0xff]
  %v375 = vld [vmem:[%s367 + $0x38] sm:$0xff]
  %v376 = vld [vmem:[%s367 + $0x40] sm:$0xf]
  %v377 = vld [vmem:[%s367 + $0x48] sm:$0xf]
  %v379 = vsel %vm85, %v376, 0
  %v382 = vsel %vm85, %v377, 0
  %384 = vmatprep.subr.mxu0 %v369
  %385 = vmatpush1.msra.mxu0 %v368
  %386 = vmatprep.subr.mxu0 %v371
  %387 = vmatpush1.msra.mxu0 %v370
  %388 = vmatprep.subr.mxu0 %v373
  %389 = vmatpush1.msra.mxu0 %v372
  %390 = vmatprep.subr.mxu0 %v375
  %391 = vmatpush1.msra.mxu0 %v374
  %392 = vmatprep.subr.mxu0 %v382
  %393 = vmatpush1.msra.mxu0 %v379
  %394 = vmatprep.subr.mxu0 0.0
  %395 = vmatpush1.msra.mxu0 0.0
  %396 = vmatprep.subr.mxu0 0.0
  %397 = vmatpush1.msra.mxu0 0.0
  %398 = vmatprep.subr.mxu0 0.0
  %399 = vmatpush1.msra.mxu0 0.0
  %400 = vmatprep.subr.mxu0 0.0
  %401 = vmatpush1.msra.mxu0 0.0
  %402 = vmatprep.subr.mxu0 0.0
  %403 = vmatpush1.msra.mxu0 0.0
  %404 = vmatprep.subr.mxu0 0.0
  %405 = vmatpush1.msra.mxu0 0.0
  %406 = vmatprep.subr.mxu0 0.0
  %407 = vmatpush1.msra.mxu0 0.0
  %408 = vmatprep.subr.mxu0 0.0
  %409 = vmatpush1.msra.mxu0 0.0
  %410 = vmatprep.subr.mxu0 0.0
  %411 = vmatpush1.msra.mxu0 0.0
  %412 = vmatprep.subr.mxu0 0.0
  %413 = vmatpush1.msra.mxu0 0.0
  %414 = vmatprep.subr.mxu0 0.0
  %415 = vmatpush1.msra.mxu0 0.0
  %416 = vmatprep.subr.mxu0 0.0
  %417 = vmatpush1.msra.mxu0 0.0
  %418 = vmatprep.subr.mxu0 0.0
  %419 = vmatpush1.msra.mxu0 0.0
  %420 = vmatprep.subr.mxu0 0.0
  %421 = vmatpush1.msra.mxu0 0.0
  %422 = vmatprep.subr.mxu0 0.0
  %423 = vmatpush1.msra.mxu0 0.0
  %424 = vmatprep.subr.mxu0 0.0
  %425 = vmatpush1.msra.mxu0 0.0
  %426 = vmatprep.subr.mxu0 0.0
  %427 = vmatpush1.msra.mxu0 0.0
  %428 = vmatprep.subr.mxu0 0.0
  %429 = vmatpush1.msra.mxu0 0.0
  %430 = vmatprep.subr.mxu0 0.0
  %431 = vmatpush1.msra.mxu0 0.0
  %432 = vmatprep.subr.mxu0 0.0
  %433 = vmatpush1.msra.mxu0 0.0
  %434 = vmatprep.subr.mxu0 0.0
  %435 = vmatpush1.msra.mxu0 0.0
  %436 = vmatprep.subr.mxu0 0.0
  %437 = vmatpush1.msra.mxu0 0.0
  %438 = vmatprep.subr.mxu0 0.0
  %439 = vmatpush1.msra.mxu0 0.0
  %440 = vmatprep.subr.mxu0 0.0
  %441 = vmatpush1.msra.mxu0 0.0
  %442 = vmatprep.subr.mxu0 0.0
  %443 = vmatpush1.msra.mxu0 0.0
  %444 = vmatprep.subr.mxu0 0.0
  %445 = vmatpush1.msra.mxu0 0.0
  %446 = vmatprep.subr.mxu0 0.0
  %447 = vmatpush1.msra.mxu0 0.0
  %448 = vmatprep.mubr.f32.mxu0 0.0
  %449 = vmatmul.mubr.f32.gmra.mrb[0].mxu0 %v74
  %v450 = vpop.f32.mrb[0].mxu0
  %v451 = vadd.f32 %v55, %v450
  %v452 = vpop.f32.mrb[0].mxu0
  %v453 = vadd.f32 %v55, %v452
  %454 = vmatprep.mubr.f32.mxu0 0.0
  %455 = vmatmul.mubr.f32.gmra.mrb[0].mxu0 %v77
  %v456 = vpop.f32.mrb[0].mxu0
  %v457 = vadd.f32 %v60, %v456
  %v458 = vpop.f32.mrb[0].mxu0
  %v459 = vadd.f32 %v60, %v458
  %460 = vmatprep.mubr.f32.mxu0 0.0
  %461 = vmatmul.mubr.f32.gmra.mrb[0].mxu0 %v80
  %v462 = vpop.f32.mrb[0].mxu0
  %v463 = vadd.f32 %v65, %v462
  %v464 = vpop.f32.mrb[0].mxu0
  %v465 = vadd.f32 %v65, %v464
  %466 = vmatprep.mubr.f32.mxu0 0.0
  %467 = vmatmul.mubr.f32.gmra.mrb[0].mxu0 %v83
  %v468 = vpop.f32.mrb[0].mxu0
  %v469 = vadd.f32 %v70, %v468
  %v470 = vpop.f32.mrb[0].mxu0
  %v471 = vadd.f32 %v70, %v470
  %472 = vdwg.mxu0
  %v473 = vmax.f32 %v451, 0.0
  %v474 = vmax.f32 %v453, 0.0
  %v475 = vmax.f32 %v457, 0.0
  %v476 = vmax.f32 %v459, 0.0
  %v477 = vmax.f32 %v463, 0.0
  %v478 = vmax.f32 %v465, 0.0
  %v479 = vmax.f32 %v469, 0.0
  %v480 = vmax.f32 %v471, 0.0
  %481 = vmatprep.subr.mxu0 %v474
  %482 = vmatpush1.msra.mxu0 %v473
  %483 = vmatprep.subr.mxu0 %v476
  %484 = vmatpush1.msra.mxu0 %v475
  %485 = vmatprep.subr.mxu0 %v478
  %486 = vmatpush1.msra.mxu0 %v477
  %487 = vmatprep.subr.mxu0 %v480
  %488 = vmatpush1.msra.mxu0 %v479
  %489 = vmatprep.subr.mxu0 0.0
  %490 = vmatpush1.msra.mxu0 0.0
  %491 = vmatprep.subr.mxu0 0.0
  %492 = vmatpush1.msra.mxu0 0.0
  %493 = vmatprep.subr.mxu0 0.0
  %494 = vmatpush1.msra.mxu0 0.0
  %495 = vmatprep.subr.mxu0 0.0
  %496 = vmatpush1.msra.mxu0 0.0
  %497 = vmatprep.subr.mxu0 0.0
  %498 = vmatpush1.msra.mxu0 0.0
  %499 = vmatprep.subr.mxu0 0.0
  %500 = vmatpush1.msra.mxu0 0.0
  %501 = vmatprep.subr.mxu0 0.0
  %502 = vmatpush1.msra.mxu0 0.0
  %503 = vmatprep.subr.mxu0 0.0
  %504 = vmatpush1.msra.mxu0 0.0
  %505 = vmatprep.subr.mxu0 0.0
  %506 = vmatpush1.msra.mxu0 0.0
  %507 = vmatprep.subr.mxu0 0.0
  %508 = vmatpush1.msra.mxu0 0.0
  %509 = vmatprep.subr.mxu0 0.0
  %510 = vmatpush1.msra.mxu0 0.0
  %511 = vmatprep.subr.mxu0 0.0
  %512 = vmatpush1.msra.mxu0 0.0
  %513 = vmatprep.subr.mxu0 0.0
  %514 = vmatpush1.msra.mxu0 0.0
  %515 = vmatprep.subr.mxu0 0.0
  %516 = vmatpush1.msra.mxu0 0.0
  %517 = vmatprep.subr.mxu0 0.0
  %518 = vmatpush1.msra.mxu0 0.0
  %519 = vmatprep.subr.mxu0 0.0
  %520 = vmatpush1.msra.mxu0 0.0
  %521 = vmatprep.subr.mxu0 0.0
  %522 = vmatpush1.msra.mxu0 0.0
  %523 = vmatprep.subr.mxu0 0.0
  %524 = vmatpush1.msra.mxu0 0.0
  %525 = vmatprep.subr.mxu0 0.0
  %526 = vmatpush1.msra.mxu0 0.0
  %527 = vmatprep.subr.mxu0 0.0
  %528 = vmatpush1.msra.mxu0 0.0
  %529 = vmatprep.subr.mxu0 0.0
  %530 = vmatpush1.msra.mxu0 0.0
  %531 = vmatprep.subr.mxu0 0.0
  %532 = vmatpush1.msra.mxu0 0.0
  %533 = vmatprep.subr.mxu0 0.0
  %534 = vmatpush1.msra.mxu0 0.0
  %535 = vmatprep.subr.mxu0 0.0
  %536 = vmatpush1.msra.mxu0 0.0
  %537 = vmatprep.subr.mxu0 0.0
  %538 = vmatpush1.msra.mxu0 0.0
  %539 = vmatprep.subr.mxu0 0.0
  %540 = vmatpush1.msra.mxu0 0.0
  %541 = vmatprep.subr.mxu0 0.0
  %542 = vmatpush1.msra.mxu0 0.0
  %543 = vmatprep.subr.mxu0 0.0
  %544 = vmatpush1.msra.mxu0 0.0
  %545 = vmatprep.mubr.f32.mxu0 0.0
  %546 = vmatmul.mubr.f32.gmra.mrb[0].mxu0 %v226
  %v547 = vpop.f32.mrb[0].mxu0
  %v548 = vadd.f32 %v192, %v547
  %v549 = vpop.f32.mrb[0].mxu0
  %v550 = vadd.f32 %v192, %v549
  %551 = vmatprep.mubr.f32.mxu0 0.0
  %552 = vmatmul.mubr.f32.gmra.mrb[0].mxu0 %v229
  %v553 = vpop.f32.mrb[0].mxu0
  %v554 = vadd.f32 %v197, %v553
  %v555 = vpop.f32.mrb[0].mxu0
  %v556 = vadd.f32 %v197, %v555
  %557 = vmatprep.mubr.f32.mxu0 0.0
  %558 = vmatmul.mubr.f32.gmra.mrb[0].mxu0 %v232
  %v559 = vpop.f32.mrb[0].mxu0
  %v560 = vadd.f32 %v202, %v559
  %v561 = vpop.f32.mrb[0].mxu0
  %v562 = vadd.f32 %v202, %v561
  %563 = vmatprep.mubr.f32.mxu0 0.0
  %564 = vmatmul.mubr.f32.gmra.mrb[0].mxu0 %v235
  %v565 = vpop.f32.mrb[0].mxu0
  %v566 = vadd.f32 %v207, %v565
  %v567 = vpop.f32.mrb[0].mxu0
  %v568 = vadd.f32 %v207, %v567
  %569 = vmatprep.mubr.f32.mxu0 0.0
  %570 = vmatmul.mubr.f32.gmra.mrb[0].mxu0 %v238
  %v571 = vpop.f32.mrb[0].mxu0
  %v572 = vadd.f32 %v212, %v571
  %v573 = vpop.f32.mrb[0].mxu0
  %v574 = vadd.f32 %v212, %v573
  %575 = vmatprep.mubr.f32.mxu0 0.0
  %576 = vmatmul.mubr.f32.gmra.mrb[0].mxu0 %v241
  %v577 = vpop.f32.mrb[0].mxu0
  %v578 = vadd.f32 %v217, %v577
  %v579 = vpop.f32.mrb[0].mxu0
  %v580 = vadd.f32 %v217, %v579
  %581 = vmatprep.mubr.f32.mxu0 0.0
  %582 = vmatmul.mubr.f32.gmra.mrb[0].mxu0 %v244
  %v583 = vpop.f32.mrb[0].mxu0
  %v584 = vadd.f32 %v222, %v583
  %v585 = vpop.f32.mrb[0].mxu0
  %v586 = vadd.f32 %v222, %v585
  %587 = vdwg.mxu0
  %s588 = scalar_lea.vmem %s5, 112
  %589 = vst [vmem:[%s588] sm:$0xff] %v548
  %590 = vst [vmem:[%s588 + $0x8] sm:$0xff] %v550
  %591 = vst [vmem:[%s588 + $0x10] sm:$0xff] %v554
  %592 = vst [vmem:[%s588 + $0x18] sm:$0xff] %v556
  %593 = vst [vmem:[%s588 + $0x20] sm:$0xff] %v560
  %594 = vst [vmem:[%s588 + $0x28] sm:$0xff] %v562
  %595 = vst [vmem:[%s588 + $0x30] sm:$0xff] %v566
  %596 = vst [vmem:[%s588 + $0x38] sm:$0xff] %v568
  %597 = vst [vmem:[%s588 + $0x40] sm:$0xff] %v572
  %598 = vst [vmem:[%s588 + $0x48] sm:$0xff] %v574
  %599 = vst [vmem:[%s588 + $0x50] sm:$0xff] %v578
  %600 = vst [vmem:[%s588 + $0x58] sm:$0xff] %v580
  %601 = vst [vmem:[%s588 + $0x60] sm:$0x3] %v584
  %602 = vst [vmem:[%s588 + $0x68] sm:$0x3] %v586
  // Predicated region
  $region22: #{tpu_custom_call.1} parent=0 // pred_check
    _
  $region23: #{tpu_custom_call.1} parent=0 // pred_check_branch
    %604 = sbr.rel (0) target = $region25
  $region24: #{tpu_custom_call.1} parent=0 // pred_region
    _
  $region25: #{tpu_custom_call.1} parent=0 // pred_fallthru
    _
  // Predicated region
  $region26: #{tpu_custom_call.1} parent=0 // pred_check
    _
  $region27: #{tpu_custom_call.1} parent=0 // pred_check_branch
    %606 = sbr.rel (0) target = $region29
  $region28: #{tpu_custom_call.1} parent=0 // pred_region
    _
  $region29: #{tpu_custom_call.1} parent=0 // pred_fallthru
    _

</llo_original>
